<compile_context>
chip_gen: v6e
topology: v6e:2x2x1
jax: 0.10.0
libtpu: 0.0.40
codegen_flags: <defaults>
</compile_context>

<pallas_src>
from functools import partial

import jax
import jax.numpy as jnp
from jax.experimental import pallas as pl
from jax.experimental.pallas import tpu as pltpu

EPSILON = 1e-07
LANES = 128


def _round_up(a: int, b: int) -> int:
    return ((a + b - 1) // b) * b


def _hw_params():
    """Per-generation block size / VMEM limit (trace-time query, guarded)."""
    vmem_cap = 64 * 1024 * 1024  # conservative default = v7x per-core VMEM
    try:
        info = pltpu.get_tpu_info()
        cap = int(getattr(info, "vmem_capacity_bytes", 0) or 0)
        if cap > 0:
            vmem_cap = cap
    except Exception:
        pass
    vmem_cap = max(vmem_cap, 32 * 1024 * 1024)
    # ~1/8 of VMEM per block; double-buffered input + output -> ~half of VMEM,
    # leaving generous headroom (8 MiB blocks on v7x, 16 MiB on v5e/v6e).
    target_tile_bytes = vmem_cap // 8
    vmem_limit = min(vmem_cap * 3 // 4, 4 * target_tile_bytes + (8 << 20))
    return target_tile_bytes, vmem_limit


def _row_tiling(rows: int, padded_row_bytes: int, sublane: int, target_tile_bytes: int):
    """Rows per block + grid length for a ragged row grid.

    tile_rows is either a multiple of `sublane` or equal to the full row
    count, so the BlockSpec always satisfies the TPU tiling rule even when the
    grid does not divide `rows` (Pallas clips the final block).
    """
    if rows <= 2 * sublane:
        return rows, 1  # block == full array: always legal, single tiny step
    target_rows = max(sublane, (target_tile_bytes // padded_row_bytes) // sublane * sublane)
    # >= 2 grid steps (v7x megacore) while capping each block near the target.
    tile_rows = min(target_rows, _round_up(pl.cdiv(rows, 2), sublane))
    return tile_rows, pl.cdiv(rows, tile_rows)


def _clip_kernel(x_ref, o_ref, *, eps: float):
    # Exact Threshold-chain semantics of Clip.forward (2 VPU selects / vreg).
    x = x_ref[...]
    lo = jnp.asarray(eps, dtype=x.dtype)
    hi = jnp.asarray(1.0 - eps, dtype=x.dtype)
    x1 = jnp.where(x > lo, x, lo)            # Threshold(eps, eps)
    o_ref[...] = jnp.where(x1 < hi, x1, hi)  # negate -> Threshold(-1+eps) -> negate


def clip_pallas(x: jax.Array, *, epsilon: float = EPSILON) -> jax.Array:
    """Applies Clip (elementwise clamp to [eps, 1-eps]) via a Pallas TPU kernel."""
    orig_shape = x.shape
    dtype = x.dtype
    if not jnp.issubdtype(dtype, jnp.floating):
        raise TypeError(f"Clip expects a floating-point input, got {dtype}")
    n = x.size
    if n == 0:
        return x

    itemsize = jnp.dtype(dtype).itemsize
    sublane = max(8, 32 // itemsize)  # 8 (f32) / 16 (bf16) / 32 (int8/fp8) rows per vreg
    target_tile_bytes, vmem_limit = _hw_params()

    trim = 0
    if n % LANES == 0:
        # Lane-dense slab: free reshape, full-lane (unmasked) stores.
        rows, cols = n // LANES, LANES
        x2d = x.reshape(rows, cols)
    else:
        # Unaligned element count: keep the original trailing dim as the lane
        # axis (block last dim == full array last dim is always legal), so no
        # whole-array pad/slice HBM round trips are needed.
        cols = orig_shape[-1] if x.ndim >= 1 else 1
        rows = n // cols
        if _round_up(cols, LANES) * itemsize * sublane > target_tile_bytes:
            # Pathologically wide trailing dim: fall back to padding the flat
            # array to the next multiple of 128 lanes (rare case only).
            padded_n = _round_up(n, LANES)
            trim = n
            rows, cols = padded_n // LANES, LANES
            x2d = jnp.pad(x.reshape(-1), (0, padded_n - n)).reshape(rows, cols)
        else:
            x2d = x.reshape(rows, cols)

    padded_row_bytes = _round_up(cols, LANES) * itemsize
    tile_rows, grid_len = _row_tiling(rows, padded_row_bytes, sublane, target_tile_bytes)

    cost = pl.CostEstimate(
        flops=2 * n,                       # two selects per element
        transcendentals=0,
        bytes_accessed=2 * n * itemsize,   # read + write, purely mem-bound
    )

    out2d = pl.pallas_call(
        partial(_clip_kernel, eps=float(epsilon)),
        out_shape=jax.ShapeDtypeStruct((rows, cols), dtype),
        grid_spec=pltpu.PrefetchScalarGridSpec(
            num_scalar_prefetch=0,
            grid=(grid_len,),
            in_specs=[pl.BlockSpec((tile_rows, cols), lambda i: (i, 0))],
            out_specs=pl.BlockSpec((tile_rows, cols), lambda i: (i, 0)),
        ),
        compiler_params=pltpu.CompilerParams(
            dimension_semantics=("parallel",),
            vmem_limit_bytes=vmem_limit,
        ),
        cost_estimate=cost,
    )(x2d)

    if trim:
        return out2d.reshape(-1)[:trim].reshape(orig_shape)
    return out2d.reshape(orig_shape)


def _clip_ref(x: jax.Array, eps: float = EPSILON) -> jax.Array:
    # Pure-JAX reference with the same Threshold-chain semantics.
    lo = jnp.asarray(eps, dtype=x.dtype)
    hi = jnp.asarray(1.0 - eps, dtype=x.dtype)
    x1 = jnp.where(x > lo, x, lo)
    return jnp.where(x1 < hi, x1, hi)


if __name__ == "__main__":
    key = jax.random.PRNGKey(0)
    k1, k2, k3, k4 = jax.random.split(key, 4)

    # 1) NCHW input (same convention the PyTorch module would receive);
    #    element count is a multiple of 128 -> lane-dense path, no pad/slice.
    x = jax.random.normal(k1, (2, 4, 16, 16), dtype=jnp.float32)
    out = jax.block_until_ready(clip_pallas(x))
    assert out.shape == x.shape and out.dtype == x.dtype
    assert jnp.allclose(out, _clip_ref(x)), "mismatch (aligned f32)"

    # 2) Ragged shape (105 elements): exercises the no-pad unaligned path
    #    where the block's last dim equals the full trailing dim.
    x2 = jax.random.uniform(k2, (3, 5, 7), dtype=jnp.float32, minval=-1.5, maxval=1.5)
    out2 = jax.block_until_ready(clip_pallas(x2))
    assert out2.shape == x2.shape
    assert jnp.allclose(out2, _clip_ref(x2)), "mismatch (ragged shape)"

    # 3) Multi-step ragged grid (488 rows, blocks of 248 rows -> partial final
    #    block): exercises the non-dividing grid path.
    x3 = jax.random.normal(k3, (61, 8, 128), dtype=jnp.float32)
    out3 = jax.block_until_ready(clip_pallas(x3))
    assert out3.shape == x3.shape
    assert jnp.allclose(out3, _clip_ref(x3)), "mismatch (multi-step ragged grid)"

    # 4) bf16 input (sublane packing = 16).
    x4 = jax.random.normal(k4, (2, 4, 16, 16), dtype=jnp.bfloat16)
    out4 = jax.block_until_ready(clip_pallas(x4))
    assert out4.dtype == jnp.bfloat16
    assert jnp.allclose(out4.astype(jnp.float32), _clip_ref(x4).astype(jnp.float32)), \
        "mismatch (bf16)"

    print("KERNEL_OK")
</pallas_src>

<mosaic_0001>
module attributes {stable_mosaic.version = 11 : i64} {
  func.func @_clip_kernel(%arg0: i32, %arg1: memref<16x128xf32, #tpu.memory_space<vmem>>, %arg2: memref<16x128xf32, #tpu.memory_space<vmem>>) attributes {dimension_semantics = [#tpu.dimension_semantics<parallel>], iteration_bounds = array<i64: 1>, scalar_prefetch = 0 : i64, scratch_operands = 0 : i64, tpu.core_type = #tpu.core_type<tc>, window_params = [{transform_indices = @transform_0, window_bounds = array<i64: 16, 128>}, {transform_indices = @transform_1, window_bounds = array<i64: 16, 128>}]} {
    %c0 = arith.constant 0 : index
    %c0_0 = arith.constant 0 : index
    %0 = vector.load %arg1[%c0, %c0_0] : memref<16x128xf32, #tpu.memory_space<vmem>>, vector<16x128xf32>
    %cst = arith.constant 1.000000e-07 : f32
    %1 = vector.broadcast %cst : f32 to vector<16x128xf32>
    %2 = arith.cmpf ogt, %0, %1 : vector<16x128xf32>
    %cst_1 = arith.constant 1.000000e-07 : f32
    %3 = vector.broadcast %cst_1 : f32 to vector<16x128xf32>
    %4 = arith.select %2, %0, %3 : vector<16x128xi1>, vector<16x128xf32>
    %cst_2 = arith.constant 0.99999988 : f32
    %5 = vector.broadcast %cst_2 : f32 to vector<16x128xf32>
    %6 = arith.cmpf olt, %4, %5 : vector<16x128xf32>
    %cst_3 = arith.constant 0.99999988 : f32
    %7 = vector.broadcast %cst_3 : f32 to vector<16x128xf32>
    %8 = arith.select %6, %4, %7 : vector<16x128xi1>, vector<16x128xf32>
    %c0_4 = arith.constant 0 : index
    %c0_5 = arith.constant 0 : index
    %9 = vector.load %arg2[%c0_4, %c0_5] : memref<16x128xf32, #tpu.memory_space<vmem>>, vector<16x128xf32>
    tpu.vector_store %arg2[%c0_4, %c0_5], %8 {strides = array<i32>} : memref<16x128xf32, #tpu.memory_space<vmem>>, vector<16x128xf32>,
    return
  }
  func.func @transform_0(%arg0: i32) -> (i32, i32) {
    %c0_i32 = arith.constant 0 : i32
    %c0_i32_0 = arith.constant 0 : i32
    return %arg0, %c0_i32 : i32, i32
  }
  func.func @transform_1(%arg0: i32) -> (i32, i32) {
    %c0_i32 = arith.constant 0 : i32
    %c0_i32_0 = arith.constant 0 : i32
    return %arg0, %c0_i32 : i32, i32
  }
}

</mosaic_0001>

<llo_original>
// kernel: tpu_custom_call.1
$region0: #{tpu_custom_call.1}
  #allocation0 [shape = 'u32[]', space=smem, size = 0x4, offset = 0x4, fixed_abs, tag = 'smem constant byte address 0x4 - core index']
  #allocation1 [shape = 'u32[144,128]{1,0:T(1,128)}', space=vmem, size = 0x12000, scoped, tag = 'internal scratch']
  %s0 = inlined_call_operand.hbm [shape: f32[16,128], index: 0, kind: input, shape index: {}]
  %s1 = inlined_call_operand.hbm [shape: f32[16,128], index: 1, kind: output, shape index: {}]
  %s2 = sld [smem:[#allocation0]]
  $region18: #{tpu_custom_call.1} parent=0
    _
  %s4 = ssub.s32 1, %s2
  %s5 = scalar_select 0, %s4, %s2
  $region1: #{tpu_custom_call.1} parent=0
    #allocation2 [shape = 'u8[8192]{0}', space=vmem, size = 0x2000, scoped, tag = 'input window, operand 0, single buffered']
    #allocation3 [shape = 's32[1]{0}', space=sflag, size = 0x4, scoped, tag = 'scoped memory for tpu_custom_call.1']
    #allocation4 [shape = 's32[1]{0}', space=sflag, size = 0x4, scoped, tag = 'scoped memory for tpu_custom_call.1']
    #allocation5 [shape = 'u8[8192]{0}', space=vmem, size = 0x2000, scoped, tag = 'output window, operand 0, single buffered']
    %6 = vsyncpa [#allocation3], 0
    %7 = vsyncpa [#allocation4], 0
    // Predicated region
    $region2: #{tpu_custom_call.1} parent=1 // pred_check
      _
    $region3: #{tpu_custom_call.1} parent=1 // pred_check_branch
      %9 = sbr.rel (0) target = $region5
    $region4: #{tpu_custom_call.1} parent=1 // pred_region
      %s11 = ssub.s32 256, 256
      %12 = vsyncadd [#allocation3], %s11
      %s13 = sshll.u32 [#allocation2], 4
      %s14 = int_to_ptr.vmem [resolvable:$true] %s13
      %19 = dma.hbm_to_vmem [thread:$0]  %s0, 256, %s14, [#allocation3], 128, 128, 8
    $region5: #{tpu_custom_call.1} parent=1 // pred_fallthru
      _
    // Predicated region
    $region6: #{tpu_custom_call.1} parent=1 // pred_check
      _
    $region7: #{tpu_custom_call.1} parent=1 // pred_check_branch
      %21 = sbr.rel (0) target = $region9
    $region8: #{tpu_custom_call.1} parent=1 // pred_region
      %22 = dma.done [#allocation3], 256
    $region9: #{tpu_custom_call.1} parent=1 // pred_fallthru
      _
    %v23 = vld [vmem:[#allocation2] sm:$0xff]
    %v24 = vld [vmem:[#allocation2 + $0x8] sm:$0xff]
    %vm25 = vcmp.gt.f32.partialorder %v23, 1e-07
    %vm26 = vcmp.gt.f32.partialorder %v24, 1e-07
    %v27 = vsel %vm25, %v23, 1e-07
    %v28 = vsel %vm26, %v24, 1e-07
    %vm29 = vcmp.lt.f32.partialorder %v27, 0.9999999
    %vm30 = vcmp.lt.f32.partialorder %v28, 0.9999999
    %v31 = vsel %vm29, %v27, 0.9999999
    %v32 = vsel %vm30, %v28, 0.9999999
    %33 = vst [vmem:[#allocation5] sm:$0xff] %v31
    %34 = vst [vmem:[#allocation5 + $0x8] sm:$0xff] %v32
    // Predicated region
    $region10: #{tpu_custom_call.1} parent=1 // pred_check
      _
    $region11: #{tpu_custom_call.1} parent=1 // pred_check_branch
      %36 = sbr.rel (0) target = $region13
    $region12: #{tpu_custom_call.1} parent=1 // pred_region
      %s38 = ssub.s32 256, 256
      %39 = vsyncadd [#allocation4], %s38
      %s40 = sshll.u32 [#allocation5], 4
      %s41 = int_to_ptr.vmem [resolvable:$true] %s40
      %46 = dma.vmem_to_hbm [thread:$0]  %s41, 256, %s1, [#allocation4], 128, 128, 8
    $region13: #{tpu_custom_call.1} parent=1 // pred_fallthru
      _
    // Predicated region
    $region14: #{tpu_custom_call.1} parent=1 // pred_check
      _
    $region15: #{tpu_custom_call.1} parent=1 // pred_check_branch
      %48 = sbr.rel (0) target = $region17
    $region16: #{tpu_custom_call.1} parent=1 // pred_region
      %49 = dma.done [#allocation4], 256
    $region17: #{tpu_custom_call.1} parent=1 // pred_fallthru
      _
    %50 = vsyncpa [#allocation3], 1
    %51 = vsyncpa [#allocation4], 1

</llo_original>
